<compile_context>
chip_gen: v7x
topology: tpu7x:2x2x1
jax: 0.10.0
libtpu: 0.0.40
codegen_flags: <defaults>
</compile_context>

<pallas_src>
import jax
import jax.numpy as jnp
from jax.experimental import pallas as pl
from jax.experimental.pallas import tpu as pltpu


def _ga_body(att, main, w1_ref, b1_ref, w2t_ref, b2_ref,
             wm_ref, wg_ref, bg_ref, o_ref):
    # Gate path. avg-pool commuted past conv[0]: W1 @ mean_hw(att) == mean_hw(W1 @ att).
    z = jnp.dot(w1_ref[...], att, preferred_element_type=jnp.float32)        # (mid_c, HWa)
    y1 = jnp.maximum(jnp.mean(z, axis=1, keepdims=True) + b1_ref[...], 0.0)  # (mid_c, 1)
    t = jnp.sum(w2t_ref[...] * y1, axis=0, keepdims=True) + b2_ref[...]      # (1, ga_ch)
    y2 = 1.0 / (1.0 + jnp.exp(-t))                                           # sigmoid
    off = jnp.sum(wg_ref[...] * y2, axis=1, keepdims=True) + bg_ref[...]     # (C_main, 1)
    # Main path: 1x1 conv as an MXU matmul + per-channel gate offset + ReLU.
    acc = jnp.dot(wm_ref[...], main, preferred_element_type=jnp.float32)     # (C_main, HW)
    o_ref[0] = jnp.maximum(acc + off, 0.0).astype(o_ref.dtype)


def _ga_kernel_shared(x_ref, w1_ref, b1_ref, w2t_ref, b2_ref,
                      wm_ref, wg_ref, bg_ref, o_ref):
    x = x_ref[0]                       # (C, HW) — drives both gate and main conv
    _ga_body(x, x, w1_ref, b1_ref, w2t_ref, b2_ref, wm_ref, wg_ref, bg_ref, o_ref)


def _ga_kernel_split(att_ref, main_ref, w1_ref, b1_ref, w2t_ref, b2_ref,
                     wm_ref, wg_ref, bg_ref, o_ref):
    _ga_body(att_ref[0], main_ref[0], w1_ref, b1_ref, w2t_ref, b2_ref,
             wm_ref, wg_ref, bg_ref, o_ref)


def ga_layer(main_feature, attention_feature, params):
    """Pallas implementation of GALayer.forward.

    main_feature: (B, C_main, H, W); attention_feature: (B, C_att, Ha, Wa) or None.
    params (1x1 conv weights squeezed to 2D, PyTorch orientation (out, in)):
      conv0_w (mid_c, C_att), conv0_b (mid_c,)
      conv2_w (ga_ch, mid_c), conv2_b (ga_ch,)
      ga_conv_w (C_main, C_main + ga_ch), ga_conv_b (C_main,)
    """
    w1, b1 = params["conv0_w"], params["conv0_b"]
    w2, b2 = params["conv2_w"], params["conv2_b"]
    wg_full, bg = params["ga_conv_w"], params["ga_conv_b"]

    B, C_main, H, W = main_feature.shape
    mid_c = w1.shape[0]
    ga_ch = w2.shape[0]
    HW = H * W

    # Split the fused ga_conv weight: main-feature part (MXU) + gate part (offset).
    wm = wg_full[:, :C_main]           # (C_main, C_main)
    wg = wg_full[:, C_main:]           # (C_main, ga_ch)
    w2t = w2.T                         # (mid_c, ga_ch)
    b1c = b1.reshape(mid_c, 1)
    b2r = b2.reshape(1, ga_ch)
    bgc = bg.reshape(C_main, 1)

    weight_args = (w1, b1c, w2t, b2r, wm, wg, bgc)
    weight_specs = [pl.BlockSpec(a.shape, lambda b: (0, 0)) for a in weight_args]

    main2 = main_feature.reshape(B, C_main, HW)     # free reshape -> lane-dense last axis
    main_spec = pl.BlockSpec((1, C_main, HW), lambda b: (b, 0, 0))

    if attention_feature is None:
        kernel = _ga_kernel_shared
        in_specs = [main_spec] + weight_specs
        args = (main2,) + weight_args
    else:
        Ba, C_att, Ha, Wa = attention_feature.shape
        att2 = attention_feature.reshape(Ba, C_att, Ha * Wa)
        att_spec = pl.BlockSpec((1, C_att, Ha * Wa), lambda b: (b, 0, 0))
        kernel = _ga_kernel_split
        in_specs = [att_spec, main_spec] + weight_specs
        args = (att2, main2) + weight_args

    out2 = pl.pallas_call(
        kernel,
        out_shape=jax.ShapeDtypeStruct((B, C_main, HW), main_feature.dtype),
        grid=(B,),
        in_specs=in_specs,
        out_specs=pl.BlockSpec((1, C_main, HW), lambda b: (b, 0, 0)),
        compiler_params=pltpu.CompilerParams(
            dimension_semantics=("parallel",)),
    )(*args)
    return out2.reshape(B, C_main, H, W)


def ga_layer_ref(main_feature, attention_feature, params):
    """Pure-JAX reference matching the PyTorch forward exactly."""
    if attention_feature is None:
        attention_feature = main_feature
    w1, b1 = params["conv0_w"], params["conv0_b"]
    w2, b2 = params["conv2_w"], params["conv2_b"]
    wg_full, bg = params["ga_conv_w"], params["ga_conv_b"]
    B, C, H, W = main_feature.shape
    pooled = attention_feature.mean(axis=(2, 3))                      # (B, C_att)
    y1 = jnp.maximum(pooled @ w1.T + b1, 0.0)                         # (B, mid_c)
    y2 = jax.nn.sigmoid(y1 @ w2.T + b2)                               # (B, ga_ch)
    gate = jnp.broadcast_to(y2[:, :, None, None], (B, y2.shape[1], H, W))
    cat = jnp.concatenate([main_feature, gate], axis=1)
    out = jnp.einsum("oc,bchw->bohw", wg_full, cat) + bg[None, :, None, None]
    return jnp.maximum(out, 0.0)


if __name__ == "__main__":
    key = jax.random.PRNGKey(0)
    B, C_main, H, W = 2, 64, 16, 16
    ga_ch, reduction = 32, 16
    mid_c = max(8, C_main // reduction)
    C_att = C_main                      # attention_channel defaults to main_channel

    keys = jax.random.split(key, 8)
    main_feature = jax.random.normal(keys[0], (B, C_main, H, W), dtype=jnp.float32)
    att_feature = jax.random.normal(keys[7], (B, C_att, H, W), dtype=jnp.float32)
    params = dict(
        conv0_w=0.2 * jax.random.normal(keys[1], (mid_c, C_att), dtype=jnp.float32),
        conv0_b=0.1 * jax.random.normal(keys[2], (mid_c,), dtype=jnp.float32),
        conv2_w=0.2 * jax.random.normal(keys[3], (ga_ch, mid_c), dtype=jnp.float32),
        conv2_b=0.1 * jax.random.normal(keys[4], (ga_ch,), dtype=jnp.float32),
        ga_conv_w=0.1 * jax.random.normal(keys[5], (C_main, C_main + ga_ch), dtype=jnp.float32),
        ga_conv_b=0.1 * jax.random.normal(keys[6], (C_main,), dtype=jnp.float32),
    )

    # Path 1: attention_feature=None (PyTorch default) — single shared input.
    out = ga_layer(main_feature, None, params)
    jax.block_until_ready(out)
    ref = ga_layer_ref(main_feature, None, params)
    assert out.shape == (B, C_main, H, W) and out.dtype == main_feature.dtype
    assert jnp.allclose(out, ref, atol=1e-4, rtol=1e-4), float(jnp.max(jnp.abs(out - ref)))

    # Path 2: explicit attention_feature.
    out2 = ga_layer(main_feature, att_feature, params)
    jax.block_until_ready(out2)
    ref2 = ga_layer_ref(main_feature, att_feature, params)
    assert jnp.allclose(out2, ref2, atol=1e-4, rtol=1e-4), float(jnp.max(jnp.abs(out2 - ref2)))

    print("KERNEL_OK")
</pallas_src>

<mosaic_0001>
module attributes {stable_mosaic.version = 11 : i64} {
  func.func @_ga_kernel_shared(%arg0: i32, %arg1: memref<1x64x256xf32, #tpu.memory_space<vmem>>, %arg2: memref<8x64xf32, #tpu.memory_space<vmem>>, %arg3: memref<8x1xf32, #tpu.memory_space<vmem>>, %arg4: memref<8x32xf32, #tpu.memory_space<vmem>>, %arg5: memref<1x32xf32, #tpu.memory_space<vmem>>, %arg6: memref<64x64xf32, #tpu.memory_space<vmem>>, %arg7: memref<64x32xf32, #tpu.memory_space<vmem>>, %arg8: memref<64x1xf32, #tpu.memory_space<vmem>>, %arg9: memref<1x64x256xf32, #tpu.memory_space<vmem>>) attributes {dimension_semantics = [#tpu.dimension_semantics<parallel>], iteration_bounds = array<i64: 2>, scalar_prefetch = 0 : i64, scratch_operands = 0 : i64, tpu.core_type = #tpu.core_type<tc>, window_params = [{transform_indices = @transform_0, window_bounds = array<i64: 1, 64, 256>}, {pipeline_mode = #tpu.pipeline_mode<synchronous>, transform_indices = @transform_1, window_bounds = array<i64: 8, 64>}, {pipeline_mode = #tpu.pipeline_mode<synchronous>, transform_indices = @transform_2, window_bounds = array<i64: 8, 1>}, {pipeline_mode = #tpu.pipeline_mode<synchronous>, transform_indices = @transform_3, window_bounds = array<i64: 8, 32>}, {pipeline_mode = #tpu.pipeline_mode<synchronous>, transform_indices = @transform_4, window_bounds = array<i64: 1, 32>}, {pipeline_mode = #tpu.pipeline_mode<synchronous>, transform_indices = @transform_5, window_bounds = array<i64: 64, 64>}, {pipeline_mode = #tpu.pipeline_mode<synchronous>, transform_indices = @transform_6, window_bounds = array<i64: 64, 32>}, {pipeline_mode = #tpu.pipeline_mode<synchronous>, transform_indices = @transform_7, window_bounds = array<i64: 64, 1>}, {transform_indices = @transform_8, window_bounds = array<i64: 1, 64, 256>}]} {
    %c0 = arith.constant 0 : index
    %c0_0 = arith.constant 0 : index
    %c0_1 = arith.constant 0 : index
    %0 = vector.load %arg1[%c0, %c0_0, %c0_1] : memref<1x64x256xf32, #tpu.memory_space<vmem>>, vector<1x64x256xf32>
    %1 = vector.shape_cast %0 : vector<1x64x256xf32> to vector<64x256xf32>
    %c0_2 = arith.constant 0 : index
    %c0_3 = arith.constant 0 : index
    %2 = vector.load %arg2[%c0_2, %c0_3] : memref<8x64xf32, #tpu.memory_space<vmem>>, vector<8x64xf32>
    %cst = arith.constant dense<0.000000e+00> : vector<8x256xf32>
    %3 = tpu.matmul %2, %1, %cst {dimension_numbers = #tpu.dot_dimension_numbers<[1], [0], [0], [1], [0, 0, 1, 1], [], []>} : vector<8x64xf32>, vector<64x256xf32>, vector<8x256xf32> -> vector<8x256xf32>
    %cst_4 = arith.constant dense<0.000000e+00> : vector<8xf32>
    %4 = vector.multi_reduction <add>, %3, %cst_4 [1] : vector<8x256xf32> to vector<8xf32>
    %5 = vector.shape_cast %4 : vector<8xf32> to vector<8x1xf32>
    %cst_5 = arith.constant 2.560000e+02 : f32
    %6 = vector.broadcast %cst_5 : f32 to vector<8x1xf32>
    %7 = arith.divf %5, %6 : vector<8x1xf32>
    %c0_6 = arith.constant 0 : index
    %c0_7 = arith.constant 0 : index
    %8 = vector.load %arg3[%c0_6, %c0_7] : memref<8x1xf32, #tpu.memory_space<vmem>>, vector<8x1xf32>
    %9 = arith.addf %7, %8 : vector<8x1xf32>
    %cst_8 = arith.constant 0.000000e+00 : f32
    %10 = vector.broadcast %cst_8 : f32 to vector<8x1xf32>
    %11 = arith.maximumf %9, %10 : vector<8x1xf32>
    %c0_9 = arith.constant 0 : index
    %c0_10 = arith.constant 0 : index
    %12 = vector.load %arg4[%c0_9, %c0_10] : memref<8x32xf32, #tpu.memory_space<vmem>>, vector<8x32xf32>
    %13 = vector.broadcast %11 : vector<8x1xf32> to vector<8x32xf32>
    %14 = arith.mulf %12, %13 : vector<8x32xf32>
    %cst_11 = arith.constant dense<0.000000e+00> : vector<32xf32>
    %15 = vector.multi_reduction <add>, %14, %cst_11 [0] : vector<8x32xf32> to vector<32xf32>
    %16 = vector.shape_cast %15 : vector<32xf32> to vector<1x32xf32>
    %c0_12 = arith.constant 0 : index
    %c0_13 = arith.constant 0 : index
    %17 = vector.load %arg5[%c0_12, %c0_13] : memref<1x32xf32, #tpu.memory_space<vmem>>, vector<1x32xf32>
    %18 = arith.addf %16, %17 : vector<1x32xf32>
    %cst_14 = arith.constant 0.000000e+00 : f32
    %19 = vector.broadcast %cst_14 : f32 to vector<1x32xf32>
    %20 = arith.subf %19, %18 : vector<1x32xf32>
    %21 = math.exp %20 : vector<1x32xf32>
    %cst_15 = arith.constant 1.000000e+00 : f32
    %22 = vector.broadcast %cst_15 : f32 to vector<1x32xf32>
    %23 = arith.addf %22, %21 : vector<1x32xf32>
    %cst_16 = arith.constant 1.000000e+00 : f32
    %24 = vector.broadcast %cst_16 : f32 to vector<1x32xf32>
    %25 = arith.divf %24, %23 : vector<1x32xf32>
    %c0_17 = arith.constant 0 : index
    %c0_18 = arith.constant 0 : index
    %26 = vector.load %arg7[%c0_17, %c0_18] : memref<64x32xf32, #tpu.memory_space<vmem>>, vector<64x32xf32>
    %27 = vector.broadcast %25 : vector<1x32xf32> to vector<64x32xf32>
    %28 = arith.mulf %26, %27 : vector<64x32xf32>
    %cst_19 = arith.constant dense<0.000000e+00> : vector<64xf32>
    %29 = vector.multi_reduction <add>, %28, %cst_19 [1] : vector<64x32xf32> to vector<64xf32>
    %30 = vector.shape_cast %29 : vector<64xf32> to vector<64x1xf32>
    %c0_20 = arith.constant 0 : index
    %c0_21 = arith.constant 0 : index
    %31 = vector.load %arg8[%c0_20, %c0_21] : memref<64x1xf32, #tpu.memory_space<vmem>>, vector<64x1xf32>
    %32 = arith.addf %30, %31 : vector<64x1xf32>
    %c0_22 = arith.constant 0 : index
    %c0_23 = arith.constant 0 : index
    %33 = vector.load %arg6[%c0_22, %c0_23] : memref<64x64xf32, #tpu.memory_space<vmem>>, vector<64x64xf32>
    %cst_24 = arith.constant dense<0.000000e+00> : vector<64x256xf32>
    %34 = tpu.matmul %33, %1, %cst_24 {dimension_numbers = #tpu.dot_dimension_numbers<[1], [0], [0], [1], [0, 0, 1, 1], [], []>} : vector<64x64xf32>, vector<64x256xf32>, vector<64x256xf32> -> vector<64x256xf32>
    %35 = vector.broadcast %32 : vector<64x1xf32> to vector<64x256xf32>
    %36 = arith.addf %34, %35 : vector<64x256xf32>
    %cst_25 = arith.constant 0.000000e+00 : f32
    %37 = vector.broadcast %cst_25 : f32 to vector<64x256xf32>
    %38 = arith.maximumf %36, %37 : vector<64x256xf32>
    %c0_26 = arith.constant 0 : index
    %c0_27 = arith.constant 0 : index
    %c0_28 = arith.constant 0 : index
    %39 = vector.load %arg9[%c0_26, %c0_27, %c0_28] : memref<1x64x256xf32, #tpu.memory_space<vmem>>, vector<1x64x256xf32>
    %40 = vector.shape_cast %39 : vector<1x64x256xf32> to vector<64x256xf32>
    %41 = vector.shape_cast %38 : vector<64x256xf32> to vector<1x64x256xf32>
    tpu.vector_store %arg9[%c0_26, %c0_27, %c0_28], %41 {strides = array<i32>} : memref<1x64x256xf32, #tpu.memory_space<vmem>>, vector<1x64x256xf32>,
    return
  }
  func.func @transform_0(%arg0: i32) -> (i32, i32, i32) {
    %c0_i32 = arith.constant 0 : i32
    %c0_i32_0 = arith.constant 0 : i32
    %c0_i32_1 = arith.constant 0 : i32
    return %arg0, %c0_i32, %c0_i32_0 : i32, i32, i32
  }
  func.func @transform_1(%arg0: i32) -> (i32, i32) {
    %c0_i32 = arith.constant 0 : i32
    %c0_i32_0 = arith.constant 0 : i32
    %c0_i32_1 = arith.constant 0 : i32
    return %c0_i32, %c0_i32_0 : i32, i32
  }
  func.func @transform_2(%arg0: i32) -> (i32, i32) {
    %c0_i32 = arith.constant 0 : i32
    %c0_i32_0 = arith.constant 0 : i32
    %c0_i32_1 = arith.constant 0 : i32
    return %c0_i32, %c0_i32_0 : i32, i32
  }
  func.func @transform_3(%arg0: i32) -> (i32, i32) {
    %c0_i32 = arith.constant 0 : i32
    %c0_i32_0 = arith.constant 0 : i32
    %c0_i32_1 = arith.constant 0 : i32
    return %c0_i32, %c0_i32_0 : i32, i32
  }
  func.func @transform_4(%arg0: i32) -> (i32, i32) {
    %c0_i32 = arith.constant 0 : i32
    %c0_i32_0 = arith.constant 0 : i32
    %c0_i32_1 = arith.constant 0 : i32
    return %c0_i32, %c0_i32_0 : i32, i32
  }
  func.func @transform_5(%arg0: i32) -> (i32, i32) {
    %c0_i32 = arith.constant 0 : i32
    %c0_i32_0 = arith.constant 0 : i32
    %c0_i32_1 = arith.constant 0 : i32
    return %c0_i32, %c0_i32_0 : i32, i32
  }
  func.func @transform_6(%arg0: i32) -> (i32, i32) {
    %c0_i32 = arith.constant 0 : i32
    %c0_i32_0 = arith.constant 0 : i32
    %c0_i32_1 = arith.constant 0 : i32
    return %c0_i32, %c0_i32_0 : i32, i32
  }
  func.func @transform_7(%arg0: i32) -> (i32, i32) {
    %c0_i32 = arith.constant 0 : i32
    %c0_i32_0 = arith.constant 0 : i32
    %c0_i32_1 = arith.constant 0 : i32
    return %c0_i32, %c0_i32_0 : i32, i32
  }
  func.func @transform_8(%arg0: i32) -> (i32, i32, i32) {
    %c0_i32 = arith.constant 0 : i32
    %c0_i32_0 = arith.constant 0 : i32
    %c0_i32_1 = arith.constant 0 : i32
    return %arg0, %c0_i32, %c0_i32_0 : i32, i32, i32
  }
}

</mosaic_0001>

<llo_original>
// kernel: tpu_custom_call.1
$region0: #{tpu_custom_call.1}
  #allocation0 [shape = 'u32[]', space=smem, size = 0x4, offset = 0x4, fixed_abs, tag = 'smem constant byte address 0x4 - core index']
  #allocation1 [shape = 'u32[144,128]{1,0:T(1,128)}', space=vmem, size = 0x12000, scoped, tag = 'internal scratch']
  %s0 = inlined_call_operand.hbm [shape: f32[2,64,256], index: 0, kind: input, shape index: {}]
  %s1 = inlined_call_operand.vmem [shape: f32[8,64], index: 1, kind: input, shape index: {}]
  %s2 = inlined_call_operand.vmem [shape: f32[8,1], index: 2, kind: input, shape index: {}]
  %s3 = inlined_call_operand.vmem [shape: f32[8,32], index: 3, kind: input, shape index: {}]
  %s4 = inlined_call_operand.vmem [shape: f32[1,32], index: 4, kind: input, shape index: {}]
  %s5 = inlined_call_operand.vmem [shape: f32[64,64], index: 5, kind: input, shape index: {}]
  %s6 = inlined_call_operand.vmem [shape: f32[64,32], index: 6, kind: input, shape index: {}]
  %s7 = inlined_call_operand.vmem [shape: f32[64,1], index: 7, kind: input, shape index: {}]
  %s8 = inlined_call_operand.hbm [shape: f32[2,64,256], index: 8, kind: output, shape index: {}]
  %s9 = sld [smem:[#allocation0]]
  $region69: #{tpu_custom_call.1} parent=0
    _
  %s11 = ssub.s32 1, %s9
  %s12 = scalar_select 0, %s11, %s9
  $region1: #{tpu_custom_call.1} parent=0
    #allocation2 [shape = 'u8[131072]{0}', space=vmem, size = 0x20000, scoped, tag = 'input window, operand 0']
    #allocation3 [shape = 's32[2]{0}', space=sflag, size = 0x8, scoped, tag = 'scoped memory for tpu_custom_call.1']
    #allocation4 [shape = 's32[2]{0}', space=sflag, size = 0x8, scoped, tag = 'scoped memory for tpu_custom_call.1']
    #allocation5 [shape = 'u8[131072]{0}', space=vmem, size = 0x20000, scoped, tag = 'output window, operand 0']
    %13 = vsyncpa [#allocation3], 0
    %s14 = scalar_lea.sflag [#allocation3], 1
    %15 = vsyncpa %s14, 0
    %16 = vsyncpa [#allocation4], 0
    %s17 = scalar_lea.sflag [#allocation4], 1
    %18 = vsyncpa %s17, 0
    loop: start=0, step=1, limit=4
    $region2: #{tpu_custom_call.1} parent=1 // loop_pre_header
      _
    $region3: #{tpu_custom_call.1} parent=1 // loop_header
      %s20 = sphi 0, %s24
      %p21 = scmp.ge.s32.totalorder %s20, 4
      %s30 = sphi 0, %s32
      %s33 = sphi 0, %s30
      %s34 = sphi 0, %s33
      %s50 = sphi 0, %s34
      %s54 = sphi 0, %s54
      %s56 = sphi 0, %s54
      %s57 = sphi 0, %s56
      %s71 = sphi 0, %s57
      %s75 = sphi 0, %s75
      %s77 = sphi 0, %s75
      %s78 = sphi 0, %s77
      %s92 = sphi 0, %s78
      %s96 = sphi 0, %s96
      %s98 = sphi 0, %s96
      %s99 = sphi 0, %s98
      %s113 = sphi 0, %s99
      %s117 = sphi 0, %s117
      %s119 = sphi 0, %s117
      %s120 = sphi 0, %s119
      %s134 = sphi 0, %s120
      %s138 = sphi 0, %s138
      %s140 = sphi 0, %s138
      %s141 = sphi 0, %s140
      %s155 = sphi 0, %s141
      %s159 = sphi 0, %s159
      %s161 = sphi 0, %s159
      %s162 = sphi 0, %s161
      %s176 = sphi 0, %s162
      %s180 = sphi 0, %s180
      %s182 = sphi 0, %s180
      %s183 = sphi 0, %s182
      %s197 = sphi 0, %s183
      %s203 = sphi 0, %s205
      %s206 = sphi 0, %s203
      %s207 = sphi 0, %s206
      %s223 = sphi 0, %s207
    $region4: #{tpu_custom_call.1} parent=1 // loop_header_branch
      %23 = sbr.rel (%p21) target = $region8
    $region5: #{tpu_custom_call.1} parent=1 // loop_body
      %s25 = ssub.s32 %s20, 1
      %s26 = ssub.s32 %s20, 2
      %s27 = sadd.s32 %s20, 1
      %s28 = ssub.s32 %s20, %s27
      %p29 = scmp.eq.s32.totalorder %s28, 0
      %s31 = sadd.s32 %s30, 1
      %s32 = scalar_select %p29, %s30, %s31
      %p35 = pneg %p29
      %p36 = scmp.eq.s32.totalorder %s20, 1
      %p37 = por %p35, %p36
      %p38 = scmp.ne.s32.totalorder %s30, %s33
      %p39 = scmp.eq.s32.totalorder %s20, 0
      %p40 = por %p38, %p39
      %p41 = scmp.ne.s32.totalorder %s30, %s33
      %p42 = scmp.eq.s32.totalorder %s25, 1
      %p43 = por %p41, %p42
      %p44 = scmp.ne.s32.totalorder %s33, %s34
      %p45 = scmp.eq.s32.totalorder %s25, 0
      %p46 = por %p44, %p45
      %p47 = scmp.ne.s32.totalorder %s33, %s34
      %p48 = scmp.eq.s32.totalorder %s26, 1
      %p49 = por %p47, %p48
      %p51 = scmp.ne.s32.totalorder %s34, %s50
      %p52 = scmp.eq.s32.totalorder %s26, 0
      %p53 = por %p51, %p52
      %s55 = sadd.s32 %s54, 1
      %p58 = scmp.eq.s32.totalorder %s20, 1
      %p59 = scmp.ne.s32.totalorder %s54, %s56
      %p60 = scmp.eq.s32.totalorder %s20, 0
      %p61 = por %p59, %p60
      %p62 = scmp.ne.s32.totalorder %s54, %s56
      %p63 = scmp.eq.s32.totalorder %s25, 1
      %p64 = por %p62, %p63
      %p65 = scmp.ne.s32.totalorder %s56, %s57
      %p66 = scmp.eq.s32.totalorder %s25, 0
      %p67 = por %p65, %p66
      %p68 = scmp.ne.s32.totalorder %s56, %s57
      %p69 = scmp.eq.s32.totalorder %s26, 1
      %p70 = por %p68, %p69
      %p72 = scmp.ne.s32.totalorder %s57, %s71
      %p73 = scmp.eq.s32.totalorder %s26, 0
      %p74 = por %p72, %p73
      %s76 = sadd.s32 %s75, 1
      %p79 = scmp.eq.s32.totalorder %s20, 1
      %p80 = scmp.ne.s32.totalorder %s75, %s77
      %p81 = scmp.eq.s32.totalorder %s20, 0
      %p82 = por %p80, %p81
      %p83 = scmp.ne.s32.totalorder %s75, %s77
      %p84 = scmp.eq.s32.totalorder %s25, 1
      %p85 = por %p83, %p84
      %p86 = scmp.ne.s32.totalorder %s77, %s78
      %p87 = scmp.eq.s32.totalorder %s25, 0
      %p88 = por %p86, %p87
      %p89 = scmp.ne.s32.totalorder %s77, %s78
      %p90 = scmp.eq.s32.totalorder %s26, 1
      %p91 = por %p89, %p90
      %p93 = scmp.ne.s32.totalorder %s78, %s92
      %p94 = scmp.eq.s32.totalorder %s26, 0
      %p95 = por %p93, %p94
      %s97 = sadd.s32 %s96, 1
      %p100 = scmp.eq.s32.totalorder %s20, 1
      %p101 = scmp.ne.s32.totalorder %s96, %s98
      %p102 = scmp.eq.s32.totalorder %s20, 0
      %p103 = por %p101, %p102
      %p104 = scmp.ne.s32.totalorder %s96, %s98
      %p105 = scmp.eq.s32.totalorder %s25, 1
      %p106 = por %p104, %p105
      %p107 = scmp.ne.s32.totalorder %s98, %s99
      %p108 = scmp.eq.s32.totalorder %s25, 0
      %p109 = por %p107, %p108
      %p110 = scmp.ne.s32.totalorder %s98, %s99
      %p111 = scmp.eq.s32.totalorder %s26, 1
      %p112 = por %p110, %p111
      %p114 = scmp.ne.s32.totalorder %s99, %s113
      %p115 = scmp.eq.s32.totalorder %s26, 0
      %p116 = por %p114, %p115
      %s118 = sadd.s32 %s117, 1
      %p121 = scmp.eq.s32.totalorder %s20, 1
      %p122 = scmp.ne.s32.totalorder %s117, %s119
      %p123 = scmp.eq.s32.totalorder %s20, 0
      %p124 = por %p122, %p123
      %p125 = scmp.ne.s32.totalorder %s117, %s119
      %p126 = scmp.eq.s32.totalorder %s25, 1
      %p127 = por %p125, %p126
      %p128 = scmp.ne.s32.totalorder %s119, %s120
      %p129 = scmp.eq.s32.totalorder %s25, 0
      %p130 = por %p128, %p129
      %p131 = scmp.ne.s32.totalorder %s119, %s120
      %p132 = scmp.eq.s32.totalorder %s26, 1
      %p133 = por %p131, %p132
      %p135 = scmp.ne.s32.totalorder %s120, %s134
      %p136 = scmp.eq.s32.totalorder %s26, 0
      %p137 = por %p135, %p136
      %s139 = sadd.s32 %s138, 1
      %p142 = scmp.eq.s32.totalorder %s20, 1
      %p143 = scmp.ne.s32.totalorder %s138, %s140
      %p144 = scmp.eq.s32.totalorder %s20, 0
      %p145 = por %p143, %p144
      %p146 = scmp.ne.s32.totalorder %s138, %s140
      %p147 = scmp.eq.s32.totalorder %s25, 1
      %p148 = por %p146, %p147
      %p149 = scmp.ne.s32.totalorder %s140, %s141
      %p150 = scmp.eq.s32.totalorder %s25, 0
      %p151 = por %p149, %p150
      %p152 = scmp.ne.s32.totalorder %s140, %s141
      %p153 = scmp.eq.s32.totalorder %s26, 1
      %p154 = por %p152, %p153
      %p156 = scmp.ne.s32.totalorder %s141, %s155
      %p157 = scmp.eq.s32.totalorder %s26, 0
      %p158 = por %p156, %p157
      %s160 = sadd.s32 %s159, 1
      %p163 = scmp.eq.s32.totalorder %s20, 1
      %p164 = scmp.ne.s32.totalorder %s159, %s161
      %p165 = scmp.eq.s32.totalorder %s20, 0
      %p166 = por %p164, %p165
      %p167 = scmp.ne.s32.totalorder %s159, %s161
      %p168 = scmp.eq.s32.totalorder %s25, 1
      %p169 = por %p167, %p168
      %p170 = scmp.ne.s32.totalorder %s161, %s162
      %p171 = scmp.eq.s32.totalorder %s25, 0
      %p172 = por %p170, %p171
      %p173 = scmp.ne.s32.totalorder %s161, %s162
      %p174 = scmp.eq.s32.totalorder %s26, 1
      %p175 = por %p173, %p174
      %p177 = scmp.ne.s32.totalorder %s162, %s176
      %p178 = scmp.eq.s32.totalorder %s26, 0
      %p179 = por %p177, %p178
      %s181 = sadd.s32 %s180, 1
      %p184 = scmp.eq.s32.totalorder %s20, 1
      %p185 = scmp.ne.s32.totalorder %s180, %s182
      %p186 = scmp.eq.s32.totalorder %s20, 0
      %p187 = por %p185, %p186
      %p188 = scmp.ne.s32.totalorder %s180, %s182
      %p189 = scmp.eq.s32.totalorder %s25, 1
      %p190 = por %p188, %p189
      %p191 = scmp.ne.s32.totalorder %s182, %s183
      %p192 = scmp.eq.s32.totalorder %s25, 0
      %p193 = por %p191, %p192
      %p194 = scmp.ne.s32.totalorder %s182, %s183
      %p195 = scmp.eq.s32.totalorder %s26, 1
      %p196 = por %p194, %p195
      %p198 = scmp.ne.s32.totalorder %s183, %s197
      %p199 = scmp.eq.s32.totalorder %s26, 0
      %p200 = por %p198, %p199
      %s201 = ssub.s32 %s20, %s27
      %p202 = scmp.eq.s32.totalorder %s201, 0
      %s204 = sadd.s32 %s203, 1
      %s205 = scalar_select %p202, %s203, %s204
      %p208 = pneg %p202
      %p209 = scmp.eq.s32.totalorder %s20, 1
      %p210 = por %p208, %p209
      %p211 = scmp.ne.s32.totalorder %s203, %s206
      %p212 = scmp.eq.s32.totalorder %s20, 0
      %p213 = por %p211, %p212
      %p214 = scmp.ne.s32.totalorder %s203, %s206
      %p215 = scmp.eq.s32.totalorder %s25, 1
      %p216 = por %p214, %p215
      %p217 = scmp.ne.s32.totalorder %s206, %s207
      %p218 = scmp.eq.s32.totalorder %s25, 0
      %p219 = por %p217, %p218
      %p220 = scmp.ne.s32.totalorder %s206, %s207
      %p221 = scmp.eq.s32.totalorder %s26, 1
      %p222 = por %p220, %p221
      %p224 = scmp.ne.s32.totalorder %s207, %s223
      %p225 = scmp.eq.s32.totalorder %s26, 0
      %p226 = por %p224, %p225
      %p227 = scmp.le.s32.totalorder 1, %s20
      %p228 = scmp.lt.s32.totalorder %s20, 3
      %p229 = pnand %p227, %p228
      %p230 = pneg %p229
      // Predicated region
      $region9: #{tpu_custom_call.1} parent=5 // pred_check
        _
      $region10: #{tpu_custom_call.1} parent=5 // pred_check_branch
        %232 = sbr.rel (%p229) target = $region12
      $region11: #{tpu_custom_call.1} parent=5 // pred_region
        %s233 = ssub.s32 %s20, 1
        // Predicated region
        $region13: #{tpu_custom_call.1} parent=11 // pred_check
          %p234 = pneg %p67
        $region14: #{tpu_custom_call.1} parent=11 // pred_check_branch
          %236 = sbr.rel (%p234) target = $region16
        $region15: #{tpu_custom_call.1} parent=11 // pred_region
          _
        $region16: #{tpu_custom_call.1} parent=11 // pred_fallthru
          _
        // Predicated region
        $region17: #{tpu_custom_call.1} parent=11 // pred_check
          %p237 = pneg %p88
        $region18: #{tpu_custom_call.1} parent=11 // pred_check_branch
          %239 = sbr.rel (%p237) target = $region20
        $region19: #{tpu_custom_call.1} parent=11 // pred_region
          _
        $region20: #{tpu_custom_call.1} parent=11 // pred_fallthru
          _
        // Predicated region
        $region21: #{tpu_custom_call.1} parent=11 // pred_check
          %p240 = pneg %p109
        $region22: #{tpu_custom_call.1} parent=11 // pred_check_branch
          %242 = sbr.rel (%p240) target = $region24
        $region23: #{tpu_custom_call.1} parent=11 // pred_region
          _
        $region24: #{tpu_custom_call.1} parent=11 // pred_fallthru
          _
        // Predicated region
        $region25: #{tpu_custom_call.1} parent=11 // pred_check
          %p243 = pneg %p130
        $region26: #{tpu_custom_call.1} parent=11 // pred_check_branch
          %245 = sbr.rel (%p243) target = $region28
        $region27: #{tpu_custom_call.1} parent=11 // pred_region
          _
        $region28: #{tpu_custom_call.1} parent=11 // pred_fallthru
          _
        // Predicated region
        $region29: #{tpu_custom_call.1} parent=11 // pred_check
          %p246 = pneg %p151
        $region30: #{tpu_custom_call.1} parent=11 // pred_check_branch
          %248 = sbr.rel (%p246) target = $region32
        $region31: #{tpu_custom_call.1} parent=11 // pred_region
          _
        $region32: #{tpu_custom_call.1} parent=11 // pred_fallthru
          _
        // Predicated region
        $region33: #{tpu_custom_call.1} parent=11 // pred_check
          %p249 = pneg %p172
        $region34: #{tpu_custom_call.1} parent=11 // pred_check_branch
          %251 = sbr.rel (%p249) target = $region36
        $region35: #{tpu_custom_call.1} parent=11 // pred_region
          _
        $region36: #{tpu_custom_call.1} parent=11 // pred_fallthru
          _
        // Predicated region
        $region37: #{tpu_custom_call.1} parent=11 // pred_check
          %p252 = pneg %p193
        $region38: #{tpu_custom_call.1} parent=11 // pred_check_branch
          %254 = sbr.rel (%p252) target = $region40
        $region39: #{tpu_custom_call.1} parent=11 // pred_region
          _
        $region40: #{tpu_custom_call.1} parent=11 // pred_fallthru
          _
      $region12: #{tpu_custom_call.1} parent=5 // pred_fallthru
        _
      %p255 = scmp.lt.s32.totalorder %s20, 2
      // Predicated region
      $region41: #{tpu_custom_call.1} parent=5 // pred_check
        %p256 = pneg %p255
      $region42: #{tpu_custom_call.1} parent=5 // pred_check_branch
        %258 = sbr.rel (%p256) target = $region44
      $region43: #{tpu_custom_call.1} parent=5 // pred_region
        // Predicated region
        $region45: #{tpu_custom_call.1} parent=43 // pred_check
          %p259 = pneg %p40
        $region46: #{tpu_custom_call.1} parent=43 // pred_check_branch
          %261 = sbr.rel (%p259) target = $region48
        $region47: #{tpu_custom_call.1} parent=43 // pred_region
          %s262 = sand.u32 %s30, 1
          %s263 = scalar_lea.sflag [#allocation3], %s262
          %s264 = sand.u32 %s30, 1
          %s265 = smul.addr %s264, 128
          %s266 = scalar_lea.vmem [#allocation2], %s265
          %s268 = ssub.s32 2048, 2048
          %269 = vsyncadd %s263, %s268
          %s270 = smul.addr %s20, 16
          %s271 = smul.addr %s270, 128
          %s272 = scalar_lea.hbm %s0, %s271
          %s273 = sshll.u32 %s266, 4
          %s274 = int_to_ptr.vmem [resolvable:$true] %s273
          %279 = dma.hbm_to_vmem [thread:$0]  %s272, 2048, %s274, %s263, 256, 256, 16
        $region48: #{tpu_custom_call.1} parent=43 // pred_fallthru
          _
      $region44: #{tpu_custom_call.1} parent=5 // pred_fallthru
        _
      %p280 = scmp.le.s32.totalorder 1, %s20
      %p281 = scmp.lt.s32.totalorder %s20, 3
      %p282 = pnand %p280, %p281
      %p283 = pneg %p282
      // Predicated region
      $region49: #{tpu_custom_call.1} parent=5 // pred_check
        _
      $region50: #{tpu_custom_call.1} parent=5 // pred_check_branch
        %285 = sbr.rel (%p282) target = $region52
      $region51: #{tpu_custom_call.1} parent=5 // pred_region
        %s286 = ssub.s32 %s20, 1
        %s287 = sand.u32 %s33, 1
        %s288 = scalar_lea.sflag [#allocation3], %s287
        %s289 = sand.u32 %s33, 1
        %s290 = smul.addr %s289, 128
        %s291 = scalar_lea.vmem [#allocation2], %s290
        // Predicated region
        $region53: #{tpu_custom_call.1} parent=51 // pred_check
          %p292 = pneg %p46
        $region54: #{tpu_custom_call.1} parent=51 // pred_check_branch
          %294 = sbr.rel (%p292) target = $region56
        $region55: #{tpu_custom_call.1} parent=51 // pred_region
          %295 = dma.done %s288, 2048
        $region56: #{tpu_custom_call.1} parent=51 // pred_fallthru
          _
        %s296 = sand.u32 %s33, 1
        %s297 = scalar_lea.sflag [#allocation3], %s296
        %s298 = sand.u32 %s33, 1
        %s299 = smul.addr %s298, 128
        %s300 = scalar_lea.vmem [#allocation2], %s299
        %p301 = pneg %p46
        %p302 = pneg %p43
        %p303 = pneg %p67
        %p304 = pneg %p64
        %p305 = pneg %p88
        %p306 = pneg %p85
        %p307 = pneg %p109
        %p308 = pneg %p106
        %p309 = pneg %p130
        %p310 = pneg %p127
        %p311 = pneg %p151
        %p312 = pneg %p148
        %p313 = pneg %p172
        %p314 = pneg %p169
        %p315 = pneg %p193
        %p316 = pneg %p190
        %p317 = pneg %p219
        %p318 = pneg %p216
        %s319 = sand.u32 %s206, 1
        %s320 = scalar_lea.sflag [#allocation4], %s319
        %s321 = sand.u32 %s206, 1
        %s322 = smul.addr %s321, 128
        %s323 = scalar_lea.vmem [#allocation5], %s322
        %v324 = vld [vmem:[%s291] sm:$0xff]
        %v325 = vld [vmem:[%s291 + $0x8] sm:$0xff]
        %v326 = vld [vmem:[%s291 + $0x10] sm:$0xff]
        %v327 = vld [vmem:[%s291 + $0x18] sm:$0xff]
        %v328 = vld [vmem:[%s291 + $0x20] sm:$0xff]
        %v329 = vld [vmem:[%s291 + $0x28] sm:$0xff]
        %v330 = vld [vmem:[%s291 + $0x30] sm:$0xff]
        %v331 = vld [vmem:[%s291 + $0x38] sm:$0xff]
        %v332 = vld [vmem:[%s291 + $0x40] sm:$0xff]
        %v333 = vld [vmem:[%s291 + $0x48] sm:$0xff]
        %v334 = vld [vmem:[%s291 + $0x50] sm:$0xff]
        %v335 = vld [vmem:[%s291 + $0x58] sm:$0xff]
        %v336 = vld [vmem:[%s291 + $0x60] sm:$0xff]
        %v337 = vld [vmem:[%s291 + $0x68] sm:$0xff]
        %v338 = vld [vmem:[%s291 + $0x70] sm:$0xff]
        %v339 = vld [vmem:[%s291 + $0x78] sm:$0xff]
        %v340 = vld [vmem:[%s1] sm:$0xff]
        %vm341 = vcmask 523264
        %v343 = vsel %vm341, %v340, 0
        %345 = vmatprep.subr.mxu0 %v325
        %346 = vmatpush1.msra.mxu0 %v324
        %347 = vmatprep.subr.mxu0 %v327
        %348 = vmatpush1.msra.mxu0 %v326
        %349 = vmatprep.subr.mxu0 %v329
        %350 = vmatpush1.msra.mxu0 %v328
        %351 = vmatprep.subr.mxu0 %v331
        %352 = vmatpush1.msra.mxu0 %v330
        %353 = vmatprep.subr.mxu0 %v333
        %354 = vmatpush1.msra.mxu0 %v332
        %355 = vmatprep.subr.mxu0 %v335
        %356 = vmatpush1.msra.mxu0 %v334
        %357 = vmatprep.subr.mxu0 %v337
        %358 = vmatpush1.msra.mxu0 %v336
        %359 = vmatprep.subr.mxu0 %v339
        %360 = vmatpush1.msra.mxu0 %v338
        %361 = vmatprep.subr.mxu0 0.0
        %362 = vmatpush1.msra.mxu0 0.0
        %363 = vmatprep.subr.mxu0 0.0
        %364 = vmatpush1.msra.mxu0 0.0
        %365 = vmatprep.subr.mxu0 0.0
        %366 = vmatpush1.msra.mxu0 0.0
        %367 = vmatprep.subr.mxu0 0.0
        %368 = vmatpush1.msra.mxu0 0.0
        %369 = vmatprep.subr.mxu0 0.0
        %370 = vmatpush1.msra.mxu0 0.0
        %371 = vmatprep.subr.mxu0 0.0
        %372 = vmatpush1.msra.mxu0 0.0
        %373 = vmatprep.subr.mxu0 0.0
        %374 = vmatpush1.msra.mxu0 0.0
        %375 = vmatprep.subr.mxu0 0.0
        %376 = vmatpush1.msra.mxu0 0.0
        %377 = vmatprep.subr.mxu0 0.0
        %378 = vmatpush1.msra.mxu0 0.0
        %379 = vmatprep.subr.mxu0 0.0
        %380 = vmatpush1.msra.mxu0 0.0
        %381 = vmatprep.subr.mxu0 0.0
        %382 = vmatpush1.msra.mxu0 0.0
        %383 = vmatprep.subr.mxu0 0.0
        %384 = vmatpush1.msra.mxu0 0.0
        %385 = vmatprep.subr.mxu0 0.0
        %386 = vmatpush1.msra.mxu0 0.0
        %387 = vmatprep.subr.mxu0 0.0
        %388 = vmatpush1.msra.mxu0 0.0
        %389 = vmatprep.subr.mxu0 0.0
        %390 = vmatpush1.msra.mxu0 0.0
        %391 = vmatprep.subr.mxu0 0.0
        %392 = vmatpush1.msra.mxu0 0.0
        %393 = vmatprep.subr.mxu0 0.0
        %394 = vmatpush1.msra.mxu0 0.0
        %395 = vmatprep.subr.mxu0 0.0
        %396 = vmatpush1.msra.mxu0 0.0
        %397 = vmatprep.subr.mxu0 0.0
        %398 = vmatpush1.msra.mxu0 0.0
        %399 = vmatprep.subr.mxu0 0.0
        %400 = vmatpush1.msra.mxu0 0.0
        %401 = vmatprep.subr.mxu0 0.0
        %402 = vmatpush1.msra.mxu0 0.0
        %403 = vmatprep.subr.mxu0 0.0
        %404 = vmatpush1.msra.mxu0 0.0
        %405 = vmatprep.subr.mxu0 0.0
        %406 = vmatpush1.msra.mxu0 0.0
        %407 = vmatprep.subr.mxu0 0.0
        %408 = vmatpush1.msra.mxu0 0.0
        %409 = vmatprep.mubr.f32.mxu0 0.0
        %410 = vmatmul.mubr.f32.gmra.mrb[0].mxu0 %v343
        %v411 = vpop.f32.mrb[0].mxu0
        %v412 = vadd.f32 0.0, %v411
        %v413 = vpop.f32.mrb[0].mxu0
        %v414 = vadd.f32 0.0, %v413
        %415 = vdwg.mxu0
        %v416 = vadd.f32 %v412, %v414
        %417 = vadd.xlane.f32.xlu0 %v416
        %v418 = vpop.xlane.xlu0 %417
        %v419 = vrcp.pop 256.0
        %v420 = vmul.f32 %v418, %v419
        %v421 = vld [vmem:[%s2] sm:$0xff]
        %v422 = vadd.f32 %v420, %v421
        %v423 = vmax.f32 %v422, 0.0
        %v424 = vld [vmem:[%s3] sm:$0xff]
        %426 = vset.pattern.permute.xlu0 0
        %427 = vperm.xlu0 %426, %v423
        %v428 = vpop.permute.xlu0 %427
        %v430 = vmul.f32 %v424, %v428
        %vm431 = vcmask 261120
        %v432 = vsel %vm431, %v430, 0.0
        %v433 = vrot.slane %v432, 4
        %v434 = vadd.f32 %v432, %v433
        %v435 = vrot.slane %v434, 2
        %v436 = vadd.f32 %v434, %v435
        %v437 = vrot.slane %v436, 1
        %v438 = vadd.f32 %v436, %v437
        %v439 = vld [vmem:[%s4] sm:$0x1]
        %v440 = vadd.f32 %v438, %v439
        %v441 = vsub.f32 0.0, %v440
        %v442 = vmul.f32 %v441, 1.442695
        %v443 = vpow.pop %v442
        %v444 = vadd.f32 %v443, 1.0
        %v445 = vrcp.pop %v444
        %v446 = vmul.f32 1.0, %v445
        %v447 = vld [vmem:[%s6] sm:$0xff]
        %v448 = vld [vmem:[%s6 + $0x8] sm:$0xff]
        %v449 = vld [vmem:[%s6 + $0x10] sm:$0xff]
        %v450 = vld [vmem:[%s6 + $0x18] sm:$0xff]
        %v451 = vld [vmem:[%s6 + $0x20] sm:$0xff]
        %v452 = vld [vmem:[%s6 + $0x28] sm:$0xff]
        %v453 = vld [vmem:[%s6 + $0x30] sm:$0xff]
        %v454 = vld [vmem:[%s6 + $0x38] sm:$0xff]
        %v455 = vlaneseq
        %v456 = vshrl.u32 %v455, 7
        %v457 = vsub.s32 0, %v456
        %v458 = vrot.slane %v446, %v457
        %v459 = vmul.f32 %v447, %v458
        %v460 = vmul.f32 %v448, %v458
        %v461 = vmul.f32 %v449, %v458
        %v462 = vmul.f32 %v450, %v458
        %v463 = vmul.f32 %v451, %v458
        %v464 = vmul.f32 %v452, %v458
        %v465 = vmul.f32 %v453, %v458
        %v466 = vmul.f32 %v454, %v458
        %v467 = vsel %vm431, %v459, 0.0
        %468 = vadd.xlane.f32.xlu0 %v467
        %v469 = vpop.xlane.xlu0 %468
        %v470 = vsel %vm431, %v460, 0.0
        %471 = vadd.xlane.f32.xlu0 %v470
        %v472 = vpop.xlane.xlu0 %471
        %v473 = vsel %vm431, %v461, 0.0
        %474 = vadd.xlane.f32.xlu0 %v473
        %v475 = vpop.xlane.xlu0 %474
        %v476 = vsel %vm431, %v462, 0.0
        %477 = vadd.xlane.f32.xlu0 %v476
        %v478 = vpop.xlane.xlu0 %477
        %v479 = vsel %vm431, %v463, 0.0
        %480 = vadd.xlane.f32.xlu0 %v479
        %v481 = vpop.xlane.xlu0 %480
        %v482 = vsel %vm431, %v464, 0.0
        %483 = vadd.xlane.f32.xlu0 %v482
        %v484 = vpop.xlane.xlu0 %483
        %v485 = vsel %vm431, %v465, 0.0
        %486 = vadd.xlane.f32.xlu0 %v485
        %v487 = vpop.xlane.xlu0 %486
        %v488 = vsel %vm431, %v466, 0.0
        %489 = vadd.xlane.f32.xlu0 %v488
        %v490 = vpop.xlane.xlu0 %489
        %v491 = vld [vmem:[%s7] sm:$0xff]
        %v492 = vld [vmem:[%s7 + $0x8] sm:$0xff]
        %v493 = vld [vmem:[%s7 + $0x10] sm:$0xff]
        %v494 = vld [vmem:[%s7 + $0x18] sm:$0xff]
        %v495 = vld [vmem:[%s7 + $0x20] sm:$0xff]
        %v496 = vld [vmem:[%s7 + $0x28] sm:$0xff]
        %v497 = vld [vmem:[%s7 + $0x30] sm:$0xff]
        %v498 = vld [vmem:[%s7 + $0x38] sm:$0xff]
        %v499 = vadd.f32 %v469, %v491
        %v500 = vadd.f32 %v472, %v492
        %v501 = vadd.f32 %v475, %v493
        %v502 = vadd.f32 %v478, %v494
        %v503 = vadd.f32 %v481, %v495
        %v504 = vadd.f32 %v484, %v496
        %v505 = vadd.f32 %v487, %v497
        %v506 = vadd.f32 %v490, %v498
        %v507 = vld [vmem:[%s5] sm:$0xff]
        %v508 = vld [vmem:[%s5 + $0x8] sm:$0xff]
        %v509 = vld [vmem:[%s5 + $0x10] sm:$0xff]
        %v510 = vld [vmem:[%s5 + $0x18] sm:$0xff]
        %v511 = vld [vmem:[%s5 + $0x20] sm:$0xff]
        %v512 = vld [vmem:[%s5 + $0x28] sm:$0xff]
        %v513 = vld [vmem:[%s5 + $0x30] sm:$0xff]
        %v514 = vld [vmem:[%s5 + $0x38] sm:$0xff]
        %516 = vset.pattern.permute.xlu0 0
        %517 = vperm.xlu0 %516, %v499
        %v518 = vpop.permute.xlu0 %517
        %521 = vset.pattern.permute.xlu0 0
        %522 = vperm.xlu0 %521, %v500
        %v523 = vpop.permute.xlu0 %522
        %526 = vset.pattern.permute.xlu0 0
        %527 = vperm.xlu0 %526, %v501
        %v528 = vpop.permute.xlu0 %527
        %531 = vset.pattern.permute.xlu0 0
        %532 = vperm.xlu0 %531, %v502
        %v533 = vpop.permute.xlu0 %532
        %536 = vset.pattern.permute.xlu0 0
        %537 = vperm.xlu0 %536, %v503
        %v538 = vpop.permute.xlu0 %537
        %541 = vset.pattern.permute.xlu0 0
        %542 = vperm.xlu0 %541, %v504
        %v543 = vpop.permute.xlu0 %542
        %546 = vset.pattern.permute.xlu0 0
        %547 = vperm.xlu0 %546, %v505
        %v548 = vpop.permute.xlu0 %547
        %551 = vset.pattern.permute.xlu0 0
        %552 = vperm.xlu0 %551, %v506
        %v553 = vpop.permute.xlu0 %552
        %v556 = vsel %vm341, %v507, 0
        %v559 = vsel %vm341, %v508, 0
        %v562 = vsel %vm341, %v509, 0
        %v565 = vsel %vm341, %v510, 0
        %v568 = vsel %vm341, %v511, 0
        %v571 = vsel %vm341, %v512, 0
        %v574 = vsel %vm341, %v513, 0
        %v577 = vsel %vm341, %v514, 0
        %579 = vmatprep.subr.mxu0 %v325
        %580 = vmatpush1.msra.mxu0 %v324
        %581 = vmatprep.subr.mxu0 %v327
        %582 = vmatpush1.msra.mxu0 %v326
        %583 = vmatprep.subr.mxu0 %v329
        %584 = vmatpush1.msra.mxu0 %v328
        %585 = vmatprep.subr.mxu0 %v331
        %586 = vmatpush1.msra.mxu0 %v330
        %587 = vmatprep.subr.mxu0 %v333
        %588 = vmatpush1.msra.mxu0 %v332
        %589 = vmatprep.subr.mxu0 %v335
        %590 = vmatpush1.msra.mxu0 %v334
        %591 = vmatprep.subr.mxu0 %v337
        %592 = vmatpush1.msra.mxu0 %v336
        %593 = vmatprep.subr.mxu0 %v339
        %594 = vmatpush1.msra.mxu0 %v338
        %595 = vmatprep.subr.mxu0 0.0
        %596 = vmatpush1.msra.mxu0 0.0
        %597 = vmatprep.subr.mxu0 0.0
        %598 = vmatpush1.msra.mxu0 0.0
        %599 = vmatprep.subr.mxu0 0.0
        %600 = vmatpush1.msra.mxu0 0.0
        %601 = vmatprep.subr.mxu0 0.0
        %602 = vmatpush1.msra.mxu0 0.0
        %603 = vmatprep.subr.mxu0 0.0
        %604 = vmatpush1.msra.mxu0 0.0
        %605 = vmatprep.subr.mxu0 0.0
        %606 = vmatpush1.msra.mxu0 0.0
        %607 = vmatprep.subr.mxu0 0.0
        %608 = vmatpush1.msra.mxu0 0.0
        %609 = vmatprep.subr.mxu0 0.0
        %610 = vmatpush1.msra.mxu0 0.0
        %611 = vmatprep.subr.mxu0 0.0
        %612 = vmatpush1.msra.mxu0 0.0
        %613 = vmatprep.subr.mxu0 0.0
        %614 = vmatpush1.msra.mxu0 0.0
        %615 = vmatprep.subr.mxu0 0.0
        %616 = vmatpush1.msra.mxu0 0.0
        %617 = vmatprep.subr.mxu0 0.0
        %618 = vmatpush1.msra.mxu0 0.0
        %619 = vmatprep.subr.mxu0 0.0
        %620 = vmatpush1.msra.mxu0 0.0
        %621 = vmatprep.subr.mxu0 0.0
        %622 = vmatpush1.msra.mxu0 0.0
        %623 = vmatprep.subr.mxu0 0.0
        %624 = vmatpush1.msra.mxu0 0.0
        %625 = vmatprep.subr.mxu0 0.0
        %626 = vmatpush1.msra.mxu0 0.0
        %627 = vmatprep.subr.mxu0 0.0
        %628 = vmatpush1.msra.mxu0 0.0
        %629 = vmatprep.subr.mxu0 0.0
        %630 = vmatpush1.msra.mxu0 0.0
        %631 = vmatprep.subr.mxu0 0.0
        %632 = vmatpush1.msra.mxu0 0.0
        %633 = vmatprep.subr.mxu0 0.0
        %634 = vmatpush1.msra.mxu0 0.0
        %635 = vmatprep.subr.mxu0 0.0
        %636 = vmatpush1.msra.mxu0 0.0
        %637 = vmatprep.subr.mxu0 0.0
        %638 = vmatpush1.msra.mxu0 0.0
        %639 = vmatprep.subr.mxu0 0.0
        %640 = vmatpush1.msra.mxu0 0.0
        %641 = vmatprep.subr.mxu0 0.0
        %642 = vmatpush1.msra.mxu0 0.0
        %643 = vmatprep.mubr.f32.mxu0 0.0
        %644 = vmatmul.mubr.f32.gmra.mrb[0].mxu0 %v556
        %v645 = vpop.f32.mrb[0].mxu0
        %v646 = vadd.f32 %v518, %v645
        %v647 = vpop.f32.mrb[0].mxu0
        %v648 = vadd.f32 %v518, %v647
        %649 = vmatprep.mubr.f32.mxu0 0.0
        %650 = vmatmul.mubr.f32.gmra.mrb[0].mxu0 %v559
        %v651 = vpop.f32.mrb[0].mxu0
        %v652 = vadd.f32 %v523, %v651
        %v653 = vpop.f32.mrb[0].mxu0
        %v654 = vadd.f32 %v523, %v653
        %655 = vmatprep.mubr.f32.mxu0 0.0
        %656 = vmatmul.mubr.f32.gmra.mrb[0].mxu0 %v562
        %v657 = vpop.f32.mrb[0].mxu0
        %v658 = vadd.f32 %v528, %v657
        %v659 = vpop.f32.mrb[0].mxu0
        %v660 = vadd.f32 %v528, %v659
        %661 = vmatprep.mubr.f32.mxu0 0.0
        %662 = vmatmul.mubr.f32.gmra.mrb[0].mxu0 %v565
        %v663 = vpop.f32.mrb[0].mxu0
        %v664 = vadd.f32 %v533, %v663
        %v665 = vpop.f32.mrb[0].mxu0
        %v666 = vadd.f32 %v533, %v665
        %667 = vmatprep.mubr.f32.mxu0 0.0
        %668 = vmatmul.mubr.f32.gmra.mrb[0].mxu0 %v568
        %v669 = vpop.f32.mrb[0].mxu0
        %v670 = vadd.f32 %v538, %v669
        %v671 = vpop.f32.mrb[0].mxu0
        %v672 = vadd.f32 %v538, %v671
        %673 = vmatprep.mubr.f32.mxu0 0.0
        %674 = vmatmul.mubr.f32.gmra.mrb[0].mxu0 %v571
        %v675 = vpop.f32.mrb[0].mxu0
        %v676 = vadd.f32 %v543, %v675
        %v677 = vpop.f32.mrb[0].mxu0
        %v678 = vadd.f32 %v543, %v677
        %679 = vmatprep.mubr.f32.mxu0 0.0
        %680 = vmatmul.mubr.f32.gmra.mrb[0].mxu0 %v574
        %v681 = vpop.f32.mrb[0].mxu0
        %v682 = vadd.f32 %v548, %v681
        %v683 = vpop.f32.mrb[0].mxu0
        %v684 = vadd.f32 %v548, %v683
        %685 = vmatprep.mubr.f32.mxu0 0.0
        %686 = vmatmul.mubr.f32.gmra.mrb[0].mxu0 %v577
        %v687 = vpop.f32.mrb[0].mxu0
        %v688 = vadd.f32 %v553, %v687
        %v689 = vpop.f32.mrb[0].mxu0
        %v690 = vadd.f32 %v553, %v689
        %691 = vdwg.mxu0
        %v692 = vmax.f32 %v646, 0.0
        %v693 = vmax.f32 %v648, 0.0
        %v694 = vmax.f32 %v652, 0.0
        %v695 = vmax.f32 %v654, 0.0
        %v696 = vmax.f32 %v658, 0.0
        %v697 = vmax.f32 %v660, 0.0
        %v698 = vmax.f32 %v664, 0.0
        %v699 = vmax.f32 %v666, 0.0
        %v700 = vmax.f32 %v670, 0.0
        %v701 = vmax.f32 %v672, 0.0
        %v702 = vmax.f32 %v676, 0.0
        %v703 = vmax.f32 %v678, 0.0
        %v704 = vmax.f32 %v682, 0.0
        %v705 = vmax.f32 %v684, 0.0
        %v706 = vmax.f32 %v688, 0.0
        %v707 = vmax.f32 %v690, 0.0
        %708 = vst [vmem:[%s323] sm:$0xff] %v692
        %709 = vst [vmem:[%s323 + $0x8] sm:$0xff] %v693
        %710 = vst [vmem:[%s323 + $0x10] sm:$0xff] %v694
        %711 = vst [vmem:[%s323 + $0x18] sm:$0xff] %v695
        %712 = vst [vmem:[%s323 + $0x20] sm:$0xff] %v696
        %713 = vst [vmem:[%s323 + $0x28] sm:$0xff] %v697
        %714 = vst [vmem:[%s323 + $0x30] sm:$0xff] %v698
        %715 = vst [vmem:[%s323 + $0x38] sm:$0xff] %v699
        %716 = vst [vmem:[%s323 + $0x40] sm:$0xff] %v700
        %717 = vst [vmem:[%s323 + $0x48] sm:$0xff] %v701
        %718 = vst [vmem:[%s323 + $0x50] sm:$0xff] %v702
        %719 = vst [vmem:[%s323 + $0x58] sm:$0xff] %v703
        %720 = vst [vmem:[%s323 + $0x60] sm:$0xff] %v704
        %721 = vst [vmem:[%s323 + $0x68] sm:$0xff] %v705
        %722 = vst [vmem:[%s323 + $0x70] sm:$0xff] %v706
        %723 = vst [vmem:[%s323 + $0x78] sm:$0xff] %v707
        %s724 = sand.u32 %s206, 1
        %s725 = scalar_lea.sflag [#allocation4], %s724
        %s726 = sand.u32 %s206, 1
        %s727 = smul.addr %s726, 128
        %s728 = scalar_lea.vmem [#allocation5], %s727
        // Predicated region
        $region57: #{tpu_custom_call.1} parent=51 // pred_check
          %p729 = pneg %p216
        $region58: #{tpu_custom_call.1} parent=51 // pred_check_branch
          %731 = sbr.rel (%p729) target = $region60
        $region59: #{tpu_custom_call.1} parent=51 // pred_region
          %s733 = ssub.s32 2048, 2048
          %734 = vsyncadd %s725, %s733
          %s735 = smul.addr %s25, 16
          %s736 = smul.addr %s735, 128
          %s737 = scalar_lea.hbm %s8, %s736
          %s738 = sshll.u32 %s728, 4
          %s739 = int_to_ptr.vmem [resolvable:$true] %s738
          %744 = dma.vmem_to_hbm [thread:$0]  %s739, 2048, %s737, %s725, 256, 256, 16
        $region60: #{tpu_custom_call.1} parent=51 // pred_fallthru
          _
      $region52: #{tpu_custom_call.1} parent=5 // pred_fallthru
        _
      %p745 = scmp.le.s32.totalorder 2, %s20
      // Predicated region
      $region61: #{tpu_custom_call.1} parent=5 // pred_check
        %p746 = pneg %p745
      $region62: #{tpu_custom_call.1} parent=5 // pred_check_branch
        %748 = sbr.rel (%p746) target = $region64
      $region63: #{tpu_custom_call.1} parent=5 // pred_region
        %s749 = ssub.s32 %s20, 2
        // Predicated region
        $region65: #{tpu_custom_call.1} parent=63 // pred_check
          %p750 = pneg %p222
        $region66: #{tpu_custom_call.1} parent=63 // pred_check_branch
          %752 = sbr.rel (%p750) target = $region68
        $region67: #{tpu_custom_call.1} parent=63 // pred_region
          %s753 = sand.u32 %s207, 1
          %s754 = scalar_lea.sflag [#allocation4], %s753
          %s755 = sand.u32 %s207, 1
          %s756 = smul.addr %s755, 128
          %s757 = scalar_lea.vmem [#allocation5], %s756
          %758 = dma.done %s754, 2048
        $region68: #{tpu_custom_call.1} parent=63 // pred_fallthru
          _
      $region64: #{tpu_custom_call.1} parent=5 // pred_fallthru
        _
    $region6: #{tpu_custom_call.1} parent=1 // loop_footer
      %s24 = sadd.s32 1, %s20
    $region7: #{tpu_custom_call.1} parent=1 // loop_footer_branch
      %19 = sbr.rel target = $region3
    $region8: #{tpu_custom_call.1} parent=1 // loop_exit
      _
    %759 = vsyncpa [#allocation3], 1
    %s760 = scalar_lea.sflag [#allocation3], 1
    %761 = vsyncpa %s760, 1
    %762 = vsyncpa [#allocation4], 1
    %s763 = scalar_lea.sflag [#allocation4], 1
    %764 = vsyncpa %s763, 1

</llo_original>
